<compile_context>
chip_gen: v5e
topology: v5e:2x2
jax: 0.10.0
libtpu: 0.0.40
codegen_flags: <defaults>
</compile_context>

<pallas_src>
import functools

import numpy as np
import jax
import jax.numpy as jnp
from jax import lax
from jax.experimental import pallas as pl
from jax.experimental.pallas import tpu as pltpu


# ----------------------------------------------------------------------------
# Bicubic interpolation weight matrix (out_size x in_size), PyTorch convention
# (a = -0.75, src = (dst + 0.5) * scale - 0.5, no antialias).
# ----------------------------------------------------------------------------
def _cubic(t, a=-0.75):
    t = np.abs(t)
    return np.where(
        t <= 1.0,
        (a + 2.0) * t**3 - (a + 3.0) * t**2 + 1.0,
        np.where(t < 2.0, a * t**3 - 5.0 * a * t**2 + 8.0 * a * t - 4.0 * a, 0.0),
    )


def bicubic_weight_matrix(out_size, in_size):
    scale = in_size / out_size
    dst = np.arange(out_size, dtype=np.float64)
    src = (dst + 0.5) * scale - 0.5
    base = np.floor(src).astype(np.int64)
    frac = src - base
    W = np.zeros((out_size, in_size), dtype=np.float32)
    for k in range(-1, 3):
        idx = np.clip(base + k, 0, in_size - 1)
        w = _cubic(k - frac).astype(np.float32)
        for i in range(out_size):
            W[i, idx[i]] += w[i]
    return W  # rows sum to 1 (partition of unity + edge-clamp accumulation)


# ----------------------------------------------------------------------------
# Hardware probes (cached).
# ----------------------------------------------------------------------------
def _round_up(x, m):
    return (x + m - 1) // m * m


@functools.lru_cache(maxsize=None)
def _device_kind():
    try:
        return jax.devices()[0].device_kind.lower()
    except Exception:
        return ""


@functools.lru_cache(maxsize=None)
def _vmem_capacity_bytes():
    try:
        cap = getattr(pltpu.get_tpu_info(), "vmem_capacity_bytes", None)
        if cap:
            return int(cap)
    except Exception:
        pass
    if "v7" in _device_kind():
        return 64 * 1024 * 1024
    return 128 * 1024 * 1024


@functools.lru_cache(maxsize=None)
def _vmem_limit_bytes():
    cap = _vmem_capacity_bytes()
    if cap >= 128 * 1024 * 1024:
        # v5e / v6e: raise the 16/32 MiB scoped default; plenty of physical VMEM.
        return 64 * 1024 * 1024
    # v7x (64 MiB physical): stay well under physical with internal-scratch headroom.
    return min(44 * 1024 * 1024, max(cap - 20 * 1024 * 1024, 16 * 1024 * 1024))


@functools.lru_cache(maxsize=None)
def _num_tensorcores():
    kind = _device_kind()
    if "v7" in kind:
        return 2            # 2 TensorCores per chip
    if "v4" in kind or "v5p" in kind:
        return 2            # megacore
    return 1


@functools.lru_cache(maxsize=None)
def _kron_gate():
    # The fused (HW, HW) Kron matmul has arithmetic intensity ~HW/4 flops/byte.
    # v5e's HBM/MXU ridge (~240) is crossed at HW~1024 (32x32), so keep the
    # fusion only up to 512 there; v6e/v7x ridges keep the 1024 gate.
    kind = _device_kind()
    if "v5 lite" in kind or "v5e" in kind or "v5lite" in kind:
        return 512
    return 1024


# ----------------------------------------------------------------------------
# Tiling helpers.
# ----------------------------------------------------------------------------
def _choose_rows(n, cap_rows, align, want_two_steps):
    """Tile height along the plane/row axis: VMEM-budget capped, aligned, >=2
    grid steps when that lets a second TensorCore run, and (when multi-step)
    preferring a divisor of n so the tail block isn't ragged/masked."""
    cap = max(int(cap_rows), align)
    if cap >= n:
        if want_two_steps and n >= 2 * align:
            return min(_round_up(-(-n // 2), align), n)
        return n                               # full dim: always a legal block shape
    rows = max((cap // align) * align, align)
    if n % rows != 0:
        for cand in range(rows, align - 1, -align):
            if n % cand == 0:
                if cand * 2 >= rows:           # don't shrink the tile by more than 2x
                    rows = cand
                break
    return rows


def _resident_spec(shape, single_buffer):
    """BlockSpec for a grid-resident operand (constant index_map)."""
    idx = lambda i: (0,) * len(shape)
    if single_buffer:
        # The 2nd pipeline buffer is dead weight for a constant index_map.
        return pl.BlockSpec(shape, idx, pipeline_mode=pl.Buffered(1))
    return pl.BlockSpec(shape, idx)


def _call_with_weight_buffer_fallback(fn, *args):
    # Prefer single-buffered resident weights; fall back to the default
    # double-buffered specs if this JAX build rejects pipeline_mode/Buffered(1).
    try:
        return fn(*args, single_buffer_weights=True)
    except Exception:
        return fn(*args, single_buffer_weights=False)


# ----------------------------------------------------------------------------
# Kernels.
# ----------------------------------------------------------------------------
def _kron_kernel(m_ref, corr_ref, x_ref, o_ref):
    # m_ref: (HWp, HWp) bf16 fused (pad-folded) weights; corr_ref: (1, HWp) f32
    # x_ref/o_ref: (TB, HWp) lane-dense tile of flattened planes.
    x = x_ref[...].astype(jnp.bfloat16)                               # VPU cast
    acc = jnp.dot(x, m_ref[...], preferred_element_type=jnp.float32)  # MXU, f32 acc
    o_ref[...] = (acc + corr_ref[...]).astype(o_ref.dtype)


def _sep_kernel(a_ref, b_ref, corr_ref, x_ref, o_ref):
    # Fused separable resize: per plane  A_eff @ X @ B_eff + corr, one HBM
    # round trip (no (NC,H,W) intermediate in HBM like the old einsum fallback).
    a = a_ref[...]                     # (H, H) bf16
    b = b_ref[...]                     # (W, W) bf16
    corr = corr_ref[...]               # (H, W) f32

    def body(i, carry):
        xp = x_ref[i].astype(jnp.bfloat16)                                   # (H, W)
        t = jnp.dot(a, xp, preferred_element_type=jnp.float32).astype(jnp.bfloat16)
        y = jnp.dot(t, b, preferred_element_type=jnp.float32) + corr
        o_ref[i] = y.astype(o_ref.dtype)
        return carry

    lax.fori_loop(0, x_ref.shape[0], body, 0)


# ----------------------------------------------------------------------------
# pallas_call wrappers.
# ----------------------------------------------------------------------------
def _kron_resize(x_flat, m_bf16, corr_row, single_buffer_weights):
    """x_flat: (NC, HWp); m_bf16: (HWp, HWp) bf16; corr_row: (1, HWp) f32."""
    NC, HWp = x_flat.shape
    in_b = x_flat.dtype.itemsize
    out_b = in_b
    vmem_limit = _vmem_limit_bytes()

    weight_bufs = 1 if single_buffer_weights else 2
    weight_bytes = HWp * HWp * 2 * weight_bufs + HWp * 4 * 2
    # per output-row VMEM footprint: double-buffered in + out tiles, the in-kernel
    # bf16 cast of x, and the f32 MXU accumulator before the store-cast.
    row_bytes = HWp * (2 * in_b + 2 * out_b + 2 + 4)
    budget = max(vmem_limit - weight_bytes - (4 << 20), 2 << 20)
    tb = _choose_rows(
        NC,
        cap_rows=min((4 << 20) // (HWp * in_b), budget // row_bytes),  # ~4 MiB x tile
        align=8,
        want_two_steps=_num_tensorcores() >= 2,
    )
    grid = (pl.cdiv(NC, tb),)

    return pl.pallas_call(
        _kron_kernel,
        out_shape=jax.ShapeDtypeStruct((NC, HWp), x_flat.dtype),
        grid_spec=pltpu.PrefetchScalarGridSpec(
            num_scalar_prefetch=0,
            grid=grid,
            in_specs=[
                _resident_spec((HWp, HWp), single_buffer_weights),   # fused weights
                _resident_spec((1, HWp), single_buffer_weights),     # fill correction
                pl.BlockSpec((tb, HWp), lambda i: (i, 0)),           # plane tile
            ],
            out_specs=pl.BlockSpec((tb, HWp), lambda i: (i, 0)),
        ),
        compiler_params=pltpu.CompilerParams(
            dimension_semantics=("parallel",),
            vmem_limit_bytes=vmem_limit,
        ),
    )(m_bf16, corr_row, x_flat)


def _sep_resize(x_planes, a_bf16, b_bf16, corr, single_buffer_weights):
    """x_planes: (NC, H, W); a: (H,H) bf16; b: (W,W) bf16; corr: (H,W) f32."""
    NC, H, W = x_planes.shape
    in_b = x_planes.dtype.itemsize
    out_b = in_b
    plane = H * W
    vmem_limit = _vmem_limit_bytes()

    weight_bufs = 1 if single_buffer_weights else 2
    weight_bytes = (H * H + W * W) * 2 * weight_bufs + plane * 4 * weight_bufs
    row_bytes = plane * (2 * in_b + 2 * out_b)               # dbl-buffered in + out
    budget = max(vmem_limit - weight_bytes - (6 << 20), 2 << 20)
    # TODO(synk): planes so large that a single (H, W) tile blows VMEM would also
    #             need H/W tiling; not needed for typical augmentation sizes.
    tp = _choose_rows(
        NC,
        cap_rows=min(max((4 << 20) // (plane * in_b), 1), max(budget // row_bytes, 1)),
        align=1,
        want_two_steps=_num_tensorcores() >= 2,
    )
    grid = (pl.cdiv(NC, tp),)

    return pl.pallas_call(
        _sep_kernel,
        out_shape=jax.ShapeDtypeStruct((NC, H, W), x_planes.dtype),
        grid_spec=pltpu.PrefetchScalarGridSpec(
            num_scalar_prefetch=0,
            grid=grid,
            in_specs=[
                _resident_spec((H, H), single_buffer_weights),
                _resident_spec((W, W), single_buffer_weights),
                _resident_spec((H, W), single_buffer_weights),
                pl.BlockSpec((tp, H, W), lambda i: (i, 0, 0)),
            ],
            out_specs=pl.BlockSpec((tp, H, W), lambda i: (i, 0, 0)),
        ),
        compiler_params=pltpu.CompilerParams(
            dimension_semantics=("parallel",),
            vmem_limit_bytes=vmem_limit,
        ),
    )(a_bf16, b_bf16, corr, x_planes)


# ----------------------------------------------------------------------------
# Weight construction + memoization (pad_h takes only a handful of values for a
# given scale_range, so this removes per-call host work and H2D upload).
# ----------------------------------------------------------------------------
_WEIGHT_CACHE = {}


def _eff_weights_np(H, W, pad_h, fill):
    Hp, Wp = H + 2 * pad_h, W + 2 * pad_h
    A = bicubic_weight_matrix(H, Hp)          # (H, Hp)
    B = bicubic_weight_matrix(W, Wp).T        # (Wp, W)
    A_eff = A[:, pad_h:pad_h + H]             # (H, H)
    B_eff = B[pad_h:pad_h + W, :]             # (W, W)
    # Constant contribution of the `fill` border (exact for any fill value).
    border = np.ones((Hp, Wp), dtype=np.float32)
    border[pad_h:pad_h + H, pad_h:pad_h + W] = 0.0
    corr = (float(fill) * (A @ border @ B)).astype(np.float32)   # (H, W)
    return A_eff.astype(np.float32), B_eff.astype(np.float32), corr


def _kron_weights(H, W, pad_h, fill, hwp):
    key = ("kron", H, W, pad_h, float(fill), hwp)
    hit = _WEIGHT_CACHE.get(key)
    if hit is not None:
        return hit
    a_eff, b_eff, corr = _eff_weights_np(H, W, pad_h, fill)
    hw = H * W
    m = np.kron(a_eff.T, b_eff)                       # (HW, HW): out_flat = x_flat @ m
    m_pad = np.zeros((hwp, hwp), np.float32)          # lane-dense (multiple-of-128) pad
    m_pad[:hw, :hw] = m
    corr_pad = np.zeros((1, hwp), np.float32)
    corr_pad[0, :hw] = corr.reshape(-1)
    vals = (jnp.asarray(m_pad, dtype=jnp.bfloat16),
            jnp.asarray(corr_pad, dtype=jnp.float32))
    _WEIGHT_CACHE[key] = vals
    return vals


def _sep_weights(H, W, pad_h, fill):
    key = ("sep", H, W, pad_h, float(fill))
    hit = _WEIGHT_CACHE.get(key)
    if hit is not None:
        return hit
    a_eff, b_eff, corr = _eff_weights_np(H, W, pad_h, fill)
    vals = (jnp.asarray(a_eff, dtype=jnp.bfloat16),
            jnp.asarray(b_eff, dtype=jnp.bfloat16),
            jnp.asarray(corr, dtype=jnp.float32))
    _WEIGHT_CACHE[key] = vals
    return vals


# ----------------------------------------------------------------------------
# ZoomOut forward (wrapper).
# ----------------------------------------------------------------------------
def zoom_out_forward(x, scale_range=(1.2, 1.5), fill=0, seed=0):
    """x: (N, C, H, W) float array (f32 or bf16), square images."""
    N, C, H, W = x.shape
    if H != W:
        raise ValueError("Only works on square images")

    scale_low, scale_high = scale_range
    # Host-side random draw (mirrors torch.empty(1).uniform_().item()): no device
    # sync, and kernel shapes below do not depend on the draw -> no recompiles.
    # TODO(synk): thread a fresh seed per call to match torch's global RNG stream.
    rng = np.random.default_rng(seed)
    u = float(rng.uniform(scale_low, scale_high))
    new_h = H * u
    if new_h - H < 1:
        return x
    pad_h = int(new_h - H)

    NC, HW = N * C, H * W

    if HW <= _kron_gate():
        # Fused Kron path: one lane-dense batched matmul per grid step.
        hwp = _round_up(HW, 128)                    # unmasked vst on the store path
        m_dev, corr_dev = _kron_weights(H, W, pad_h, fill, hwp)
        x_flat = x.reshape(NC, HW)
        if hwp != HW:
            x_flat = jnp.pad(x_flat, ((0, 0), (0, hwp - HW)))
        out = _call_with_weight_buffer_fallback(_kron_resize, x_flat, m_dev, corr_dev)
        if hwp != HW:
            out = out[:, :HW]
        return out.reshape(N, C, H, W)

    # Separable fused path (replaces the old XLA einsum fallback: no (NC,H,W)
    # f32 intermediate round-trips HBM).
    a_dev, b_dev, corr_dev = _sep_weights(H, W, pad_h, fill)
    out = _call_with_weight_buffer_fallback(
        _sep_resize, x.reshape(NC, H, W), a_dev, b_dev, corr_dev)
    return out.reshape(N, C, H, W)


# ----------------------------------------------------------------------------
# Self-test.
# ----------------------------------------------------------------------------
if __name__ == "__main__":
    key = jax.random.PRNGKey(0)
    k1, k2 = jax.random.split(key)

    # ---- small-image (Kron-fused) path: (2, 4, 16, 16) ----
    x = jax.random.uniform(k1, (2, 4, 16, 16), dtype=jnp.float32)
    out = zoom_out_forward(x, scale_range=(1.2, 1.5), fill=0, seed=0)
    out = jax.block_until_ready(out)
    assert out.shape == x.shape, (out.shape, x.shape)
    assert out.dtype == x.dtype
    assert bool(jnp.all(jnp.isfinite(out)))

    # Reference: full-precision pad + separable bicubic resize (same scale draw).
    rng = np.random.default_rng(0)
    u = float(rng.uniform(1.2, 1.5))
    pad_h = int(16 * u - 16)
    Hp = 16 + 2 * pad_h
    padded = np.pad(np.asarray(x), ((0, 0), (0, 0), (pad_h, pad_h), (pad_h, pad_h)))
    A = bicubic_weight_matrix(16, Hp)
    ref = np.einsum("hp,ncpq,qw->nchw", A, padded, A.T)
    # bf16 operands in the kernel -> loose-ish tolerance.
    np.testing.assert_allclose(np.asarray(out), ref, atol=3e-2, rtol=3e-2)

    # Memoization: a second call with the same (pad_h, fill) must hit the cache.
    n_cached = len(_WEIGHT_CACHE)
    out2 = jax.block_until_ready(zoom_out_forward(x, (1.2, 1.5), fill=0, seed=0))
    assert len(_WEIGHT_CACHE) == n_cached
    np.testing.assert_allclose(np.asarray(out2), ref, atol=3e-2, rtol=3e-2)

    # ---- larger-image (separable fused) path: (1, 2, 40, 40), non-zero fill ----
    x_big = jax.random.uniform(k2, (1, 2, 40, 40), dtype=jnp.float32)
    out_big = jax.block_until_ready(zoom_out_forward(x_big, (1.2, 1.5), fill=2, seed=3))
    assert out_big.shape == x_big.shape and out_big.dtype == x_big.dtype
    rng = np.random.default_rng(3)
    u = float(rng.uniform(1.2, 1.5))
    pad_h = int(40 * u - 40)
    Hp = 40 + 2 * pad_h
    padded = np.pad(np.asarray(x_big), ((0, 0), (0, 0), (pad_h, pad_h), (pad_h, pad_h)),
                    constant_values=2.0)
    A = bicubic_weight_matrix(40, Hp)
    ref_big = np.einsum("hp,ncpq,qw->nchw", A, padded, A.T)
    np.testing.assert_allclose(np.asarray(out_big), ref_big, atol=3e-2, rtol=3e-2)

    print("KERNEL_OK")
</pallas_src>

<mosaic_0001>
module attributes {stable_mosaic.version = 11 : i64} {
  func.func @_kron_kernel(%arg0: i32, %arg1: memref<256x256xbf16, #tpu.memory_space<vmem>>, %arg2: memref<1x256xf32, #tpu.memory_space<vmem>>, %arg3: memref<8x256xf32, #tpu.memory_space<vmem>>, %arg4: memref<8x256xf32, #tpu.memory_space<vmem>>) attributes {dimension_semantics = [#tpu.dimension_semantics<parallel>], iteration_bounds = array<i64: 1>, scalar_prefetch = 0 : i64, scratch_operands = 0 : i64, tpu.core_type = #tpu.core_type<tc>, window_params = [{pipeline_mode = #tpu.pipeline_mode<synchronous>, transform_indices = @transform_0, window_bounds = array<i64: 256, 256>}, {pipeline_mode = #tpu.pipeline_mode<synchronous>, transform_indices = @transform_1, window_bounds = array<i64: 1, 256>}, {transform_indices = @transform_2, window_bounds = array<i64: 8, 256>}, {transform_indices = @transform_3, window_bounds = array<i64: 8, 256>}]} {
    %c0 = arith.constant 0 : index
    %c0_0 = arith.constant 0 : index
    %0 = vector.load %arg3[%c0, %c0_0] : memref<8x256xf32, #tpu.memory_space<vmem>>, vector<8x256xf32>
    %1 = arith.truncf %0 : vector<8x256xf32> to vector<8x256xbf16>
    %c0_1 = arith.constant 0 : index
    %c0_2 = arith.constant 0 : index
    %2 = vector.load %arg1[%c0_1, %c0_2] : memref<256x256xbf16, #tpu.memory_space<vmem>>, vector<256x256xbf16>
    %cst = arith.constant dense<0.000000e+00> : vector<8x256xf32>
    %3 = tpu.matmul %1, %2, %cst {dimension_numbers = #tpu.dot_dimension_numbers<[1], [0], [0], [1], [0, 0, 1, 1], [], []>} : vector<8x256xbf16>, vector<256x256xbf16>, vector<8x256xf32> -> vector<8x256xf32>
    %c0_3 = arith.constant 0 : index
    %c0_4 = arith.constant 0 : index
    %4 = vector.load %arg2[%c0_3, %c0_4] : memref<1x256xf32, #tpu.memory_space<vmem>>, vector<1x256xf32>
    %5 = vector.broadcast %4 : vector<1x256xf32> to vector<8x256xf32>
    %6 = arith.addf %3, %5 : vector<8x256xf32>
    %c0_5 = arith.constant 0 : index
    %c0_6 = arith.constant 0 : index
    %7 = vector.load %arg4[%c0_5, %c0_6] : memref<8x256xf32, #tpu.memory_space<vmem>>, vector<8x256xf32>
    tpu.vector_store %arg4[%c0_5, %c0_6], %6 {strides = array<i32>} : memref<8x256xf32, #tpu.memory_space<vmem>>, vector<8x256xf32>,
    return
  }
  func.func @transform_0(%arg0: i32) -> (i32, i32) {
    %c0_i32 = arith.constant 0 : i32
    %c0_i32_0 = arith.constant 0 : i32
    %c0_i32_1 = arith.constant 0 : i32
    return %c0_i32, %c0_i32_0 : i32, i32
  }
  func.func @transform_1(%arg0: i32) -> (i32, i32) {
    %c0_i32 = arith.constant 0 : i32
    %c0_i32_0 = arith.constant 0 : i32
    %c0_i32_1 = arith.constant 0 : i32
    return %c0_i32, %c0_i32_0 : i32, i32
  }
  func.func @transform_2(%arg0: i32) -> (i32, i32) {
    %c0_i32 = arith.constant 0 : i32
    %c0_i32_0 = arith.constant 0 : i32
    return %arg0, %c0_i32 : i32, i32
  }
  func.func @transform_3(%arg0: i32) -> (i32, i32) {
    %c0_i32 = arith.constant 0 : i32
    %c0_i32_0 = arith.constant 0 : i32
    return %arg0, %c0_i32 : i32, i32
  }
}

module attributes {stable_mosaic.version = 11 : i64} {
  func.func @_kron_kernel(%arg0: i32, %arg1: memref<256x256xbf16, #tpu.memory_space<vmem>>, %arg2: memref<1x256xf32, #tpu.memory_space<vmem>>, %arg3: memref<8x256xf32, #tpu.memory_space<vmem>>, %arg4: memref<8x256xf32, #tpu.memory_space<vmem>>) attributes {dimension_semantics = [#tpu.dimension_semantics<parallel>], iteration_bounds = array<i64: 1>, scalar_prefetch = 0 : i64, scratch_operands = 0 : i64, tpu.core_type = #tpu.core_type<tc>, window_params = [{pipeline_mode = #tpu.pipeline_mode<synchronous>, transform_indices = @transform_0, window_bounds = array<i64: 256, 256>}, {pipeline_mode = #tpu.pipeline_mode<synchronous>, transform_indices = @transform_1, window_bounds = array<i64: 1, 256>}, {transform_indices = @transform_2, window_bounds = array<i64: 8, 256>}, {transform_indices = @transform_3, window_bounds = array<i64: 8, 256>}]} {
    %c0 = arith.constant 0 : index
    %c0_0 = arith.constant 0 : index
    %0 = vector.load %arg3[%c0, %c0_0] : memref<8x256xf32, #tpu.memory_space<vmem>>, vector<8x256xf32>
    %1 = arith.truncf %0 : vector<8x256xf32> to vector<8x256xbf16>
    %c0_1 = arith.constant 0 : index
    %c0_2 = arith.constant 0 : index
    %2 = vector.load %arg1[%c0_1, %c0_2] : memref<256x256xbf16, #tpu.memory_space<vmem>>, vector<256x256xbf16>
    %cst = arith.constant dense<0.000000e+00> : vector<8x256xf32>
    %3 = tpu.matmul %1, %2, %cst {dimension_numbers = #tpu.dot_dimension_numbers<[1], [0], [0], [1], [0, 0, 1, 1], [], []>} : vector<8x256xbf16>, vector<256x256xbf16>, vector<8x256xf32> -> vector<8x256xf32>
    %c0_3 = arith.constant 0 : index
    %c0_4 = arith.constant 0 : index
    %4 = vector.load %arg2[%c0_3, %c0_4] : memref<1x256xf32, #tpu.memory_space<vmem>>, vector<1x256xf32>
    %5 = vector.broadcast %4 : vector<1x256xf32> to vector<8x256xf32>
    %6 = arith.addf %3, %5 : vector<8x256xf32>
    %c0_5 = arith.constant 0 : index
    %c0_6 = arith.constant 0 : index
    %7 = vector.load %arg4[%c0_5, %c0_6] : memref<8x256xf32, #tpu.memory_space<vmem>>, vector<8x256xf32>
    tpu.vector_store %arg4[%c0_5, %c0_6], %6 {strides = array<i32>} : memref<8x256xf32, #tpu.memory_space<vmem>>, vector<8x256xf32>,
    return
  }
  func.func @transform_0(%arg0: i32) -> (i32, i32) {
    %c0_i32 = arith.constant 0 : i32
    %c0_i32_0 = arith.constant 0 : i32
    %c0_i32_1 = arith.constant 0 : i32
    return %c0_i32, %c0_i32_0 : i32, i32
  }
  func.func @transform_1(%arg0: i32) -> (i32, i32) {
    %c0_i32 = arith.constant 0 : i32
    %c0_i32_0 = arith.constant 0 : i32
    %c0_i32_1 = arith.constant 0 : i32
    return %c0_i32, %c0_i32_0 : i32, i32
  }
  func.func @transform_2(%arg0: i32) -> (i32, i32) {
    %c0_i32 = arith.constant 0 : i32
    %c0_i32_0 = arith.constant 0 : i32
    return %arg0, %c0_i32 : i32, i32
  }
  func.func @transform_3(%arg0: i32) -> (i32, i32) {
    %c0_i32 = arith.constant 0 : i32
    %c0_i32_0 = arith.constant 0 : i32
    return %arg0, %c0_i32 : i32, i32
  }
}

</mosaic_0001>

<llo_original>
// kernel: tpu_custom_call.1
$region0: #{tpu_custom_call.1}
  #allocation0 [shape = 'u32[]', space=smem, size = 0x4, offset = 0x4, fixed_abs, tag = 'smem constant byte address 0x4 - core index']
  #allocation1 [shape = 'u32[72,128]{1,0:T(1,128)}', space=vmem, size = 0x9000, scoped, tag = 'internal scratch']
  %s0 = inlined_call_operand.hbm [shape: bf16[256,256], index: 0, kind: input, shape index: {}]
  %s1 = inlined_call_operand.hbm [shape: f32[1,256], index: 1, kind: input, shape index: {}]
  %s2 = inlined_call_operand.hbm [shape: f32[8,256], index: 2, kind: input, shape index: {}]
  %s3 = inlined_call_operand.hbm [shape: f32[8,256], index: 3, kind: output, shape index: {}]
  %s4 = sld [smem:[#allocation0]]
  $region34: #{tpu_custom_call.1} parent=0
    _
  %s6 = ssub.s32 1, %s4
  %s7 = scalar_select 0, %s6, %s4
  $region1: #{tpu_custom_call.1} parent=0
    #allocation2 [shape = 'u8[131072]{0}', space=vmem, size = 0x20000, scoped, tag = 'input window, operand 0, single buffered']
    #allocation3 [shape = 's32[1]{0}', space=sflag, size = 0x4, scoped, tag = 'scoped memory for tpu_custom_call.1']
    #allocation4 [shape = 's32[1]{0}', space=sflag, size = 0x4, scoped, tag = 'scoped memory for tpu_custom_call.1']
    #allocation5 [shape = 'u8[1024]{0}', space=vmem, size = 0x400, scoped, tag = 'input window, operand 1, single buffered']
    #allocation6 [shape = 's32[1]{0}', space=sflag, size = 0x4, scoped, tag = 'scoped memory for tpu_custom_call.1']
    #allocation7 [shape = 'u8[8192]{0}', space=vmem, size = 0x2000, scoped, tag = 'input window, operand 2, single buffered']
    #allocation8 [shape = 'u8[8192]{0}', space=vmem, size = 0x2000, scoped, tag = 'output window, operand 0, single buffered']
    %8 = vsyncpa [#allocation3], 0
    %9 = vsyncpa [#allocation6], 0
    %10 = vsyncpa [#allocation4], 0
    // Predicated region
    $region2: #{tpu_custom_call.1} parent=1 // pred_check
      _
    $region3: #{tpu_custom_call.1} parent=1 // pred_check_branch
      %12 = sbr.rel (0) target = $region5
    $region4: #{tpu_custom_call.1} parent=1 // pred_region
      %14 = vsyncadd [#allocation3], 0
      %s15 = sshll.u32 %s0, 4
      %s16 = int_to_ptr.hbm [resolvable:$true] %s15
      %s17 = sshll.u32 [#allocation2], 4
      %s18 = int_to_ptr.vmem [resolvable:$true] %s17
      %23 = dma.hbm_to_vmem [thread:$0]  %s16, 4096, %s18, [#allocation3], 128, 128, 8
    $region5: #{tpu_custom_call.1} parent=1 // pred_fallthru
      _
    // Predicated region
    $region6: #{tpu_custom_call.1} parent=1 // pred_check
      _
    $region7: #{tpu_custom_call.1} parent=1 // pred_check_branch
      %25 = sbr.rel (0) target = $region9
    $region8: #{tpu_custom_call.1} parent=1 // pred_region
      %27 = vsyncadd [#allocation6], 0
      %s29 = sshll.u32 %s1, 4
      %s30 = int_to_ptr.hbm [resolvable:$true] %s29
      %s31 = sshll.u32 [#allocation5], 4
      %s32 = int_to_ptr.vmem [resolvable:$true] %s31
      %34 = dma.hbm_to_vmem [thread:$0]  %s30, 32, %s32, [#allocation6]
    $region9: #{tpu_custom_call.1} parent=1 // pred_fallthru
      _
    // Predicated region
    $region10: #{tpu_custom_call.1} parent=1 // pred_check
      _
    $region11: #{tpu_custom_call.1} parent=1 // pred_check_branch
      %36 = sbr.rel (0) target = $region13
    $region12: #{tpu_custom_call.1} parent=1 // pred_region
      %38 = vsyncadd [#allocation6], 0
      %s40 = sshll.u32 %s2, 4
      %s41 = int_to_ptr.hbm [resolvable:$true] %s40
      %s42 = sshll.u32 [#allocation7], 4
      %s43 = int_to_ptr.vmem [resolvable:$true] %s42
      %45 = dma.hbm_to_vmem [thread:$0]  %s41, 256, %s43, [#allocation6]
    $region13: #{tpu_custom_call.1} parent=1 // pred_fallthru
      _
    // Predicated region
    $region14: #{tpu_custom_call.1} parent=1 // pred_check
      _
    $region15: #{tpu_custom_call.1} parent=1 // pred_check_branch
      %47 = sbr.rel (0) target = $region17
    $region16: #{tpu_custom_call.1} parent=1 // pred_region
      %49 = dma.done [#allocation3], 4096
    $region17: #{tpu_custom_call.1} parent=1 // pred_fallthru
      _
    // Predicated region
    $region18: #{tpu_custom_call.1} parent=1 // pred_check
      _
    $region19: #{tpu_custom_call.1} parent=1 // pred_check_branch
      %51 = sbr.rel (0) target = $region21
    $region20: #{tpu_custom_call.1} parent=1 // pred_region
      %53 = dma.done [#allocation6], 32
    $region21: #{tpu_custom_call.1} parent=1 // pred_fallthru
      _
    // Predicated region
    $region22: #{tpu_custom_call.1} parent=1 // pred_check
      _
    $region23: #{tpu_custom_call.1} parent=1 // pred_check_branch
      %55 = sbr.rel (0) target = $region25
    $region24: #{tpu_custom_call.1} parent=1 // pred_region
      %57 = dma.done [#allocation6], 256
    $region25: #{tpu_custom_call.1} parent=1 // pred_fallthru
      _
    %v58 = vld [vmem:[#allocation7] sm:$0xff]
    %v59 = vld [vmem:[#allocation7 + $0x8] sm:$0xff]
    %v60 = vpack.c.bf16 %v58, %v58
    %v61 = vpack.c.bf16 %v59, %v59
    %v62 = vld [vmem:[#allocation2] sm:$0xff]
    %v63 = vld [vmem:[#allocation2 + $0x8] sm:$0xff]
    %v64 = vld [vmem:[#allocation2 + $0x10] sm:$0xff]
    %v65 = vld [vmem:[#allocation2 + $0x18] sm:$0xff]
    %v66 = vld [vmem:[#allocation2 + $0x20] sm:$0xff]
    %v67 = vld [vmem:[#allocation2 + $0x28] sm:$0xff]
    %v68 = vld [vmem:[#allocation2 + $0x30] sm:$0xff]
    %v69 = vld [vmem:[#allocation2 + $0x38] sm:$0xff]
    %v70 = vld [vmem:[#allocation2 + $0x40] sm:$0xff]
    %v71 = vld [vmem:[#allocation2 + $0x48] sm:$0xff]
    %v72 = vld [vmem:[#allocation2 + $0x50] sm:$0xff]
    %v73 = vld [vmem:[#allocation2 + $0x58] sm:$0xff]
    %v74 = vld [vmem:[#allocation2 + $0x60] sm:$0xff]
    %v75 = vld [vmem:[#allocation2 + $0x68] sm:$0xff]
    %v76 = vld [vmem:[#allocation2 + $0x70] sm:$0xff]
    %v77 = vld [vmem:[#allocation2 + $0x78] sm:$0xff]
    %v78 = vld [vmem:[#allocation2 + $0x80] sm:$0xff]
    %v79 = vld [vmem:[#allocation2 + $0x88] sm:$0xff]
    %v80 = vld [vmem:[#allocation2 + $0x90] sm:$0xff]
    %v81 = vld [vmem:[#allocation2 + $0x98] sm:$0xff]
    %v82 = vld [vmem:[#allocation2 + $0xa0] sm:$0xff]
    %v83 = vld [vmem:[#allocation2 + $0xa8] sm:$0xff]
    %v84 = vld [vmem:[#allocation2 + $0xb0] sm:$0xff]
    %v85 = vld [vmem:[#allocation2 + $0xb8] sm:$0xff]
    %v86 = vld [vmem:[#allocation2 + $0xc0] sm:$0xff]
    %v87 = vld [vmem:[#allocation2 + $0xc8] sm:$0xff]
    %v88 = vld [vmem:[#allocation2 + $0xd0] sm:$0xff]
    %v89 = vld [vmem:[#allocation2 + $0xd8] sm:$0xff]
    %v90 = vld [vmem:[#allocation2 + $0xe0] sm:$0xff]
    %v91 = vld [vmem:[#allocation2 + $0xe8] sm:$0xff]
    %v92 = vld [vmem:[#allocation2 + $0xf0] sm:$0xff]
    %v93 = vld [vmem:[#allocation2 + $0xf8] sm:$0xff]
    %v94 = vld [vmem:[#allocation5] sm:$0x3]
    %v96 = vperm.slane %v94, 0
    %v97 = vperm.slane %v94, 1
    %v132 = vunpack.c.l.b16 %v62
    %v133 = vunpack.c.h.b16 %v62
    %v134 = vunpack.c.l.b16 %v63
    %v135 = vunpack.c.h.b16 %v63
    %v136 = vunpack.c.l.b16 %v64
    %v137 = vunpack.c.h.b16 %v64
    %v138 = vunpack.c.l.b16 %v65
    %v139 = vunpack.c.h.b16 %v65
    %v140 = vunpack.c.l.b16 %v66
    %v141 = vunpack.c.h.b16 %v66
    %v142 = vunpack.c.l.b16 %v67
    %v143 = vunpack.c.h.b16 %v67
    %v144 = vunpack.c.l.b16 %v68
    %v145 = vunpack.c.h.b16 %v68
    %v146 = vunpack.c.l.b16 %v69
    %v147 = vunpack.c.h.b16 %v69
    %v148 = vunpack.c.l.b16 %v70
    %v149 = vunpack.c.h.b16 %v70
    %v150 = vunpack.c.l.b16 %v71
    %v151 = vunpack.c.h.b16 %v71
    %v152 = vunpack.c.l.b16 %v72
    %v153 = vunpack.c.h.b16 %v72
    %v154 = vunpack.c.l.b16 %v73
    %v155 = vunpack.c.h.b16 %v73
    %v156 = vunpack.c.l.b16 %v74
    %v157 = vunpack.c.h.b16 %v74
    %v158 = vunpack.c.l.b16 %v75
    %v159 = vunpack.c.h.b16 %v75
    %v160 = vunpack.c.l.b16 %v76
    %v161 = vunpack.c.h.b16 %v76
    %v162 = vunpack.c.l.b16 %v77
    %v163 = vunpack.c.h.b16 %v77
    %v164 = vunpack.c.l.b16 %v78
    %v165 = vunpack.c.h.b16 %v78
    %v166 = vunpack.c.l.b16 %v79
    %v167 = vunpack.c.h.b16 %v79
    %v168 = vunpack.c.l.b16 %v80
    %v169 = vunpack.c.h.b16 %v80
    %v170 = vunpack.c.l.b16 %v81
    %v171 = vunpack.c.h.b16 %v81
    %v172 = vunpack.c.l.b16 %v82
    %v173 = vunpack.c.h.b16 %v82
    %v174 = vunpack.c.l.b16 %v83
    %v175 = vunpack.c.h.b16 %v83
    %v176 = vunpack.c.l.b16 %v84
    %v177 = vunpack.c.h.b16 %v84
    %v178 = vunpack.c.l.b16 %v85
    %v179 = vunpack.c.h.b16 %v85
    %v180 = vunpack.c.l.b16 %v86
    %v181 = vunpack.c.h.b16 %v86
    %v182 = vunpack.c.l.b16 %v87
    %v183 = vunpack.c.h.b16 %v87
    %v184 = vunpack.c.l.b16 %v88
    %v185 = vunpack.c.h.b16 %v88
    %v186 = vunpack.c.l.b16 %v89
    %v187 = vunpack.c.h.b16 %v89
    %v188 = vunpack.c.l.b16 %v90
    %v189 = vunpack.c.h.b16 %v90
    %v190 = vunpack.c.l.b16 %v91
    %v191 = vunpack.c.h.b16 %v91
    %v192 = vunpack.c.l.b16 %v92
    %v193 = vunpack.c.h.b16 %v92
    %v194 = vunpack.c.l.b16 %v93
    %v195 = vunpack.c.h.b16 %v93
    %v196 = vpack.c.b16 %v134, %v132
    %v197 = vpack.c.b16 %v135, %v133
    %v198 = vpack.c.b16 %v138, %v136
    %v199 = vpack.c.b16 %v139, %v137
    %v200 = vpack.c.b16 %v142, %v140
    %v201 = vpack.c.b16 %v143, %v141
    %v202 = vpack.c.b16 %v146, %v144
    %v203 = vpack.c.b16 %v147, %v145
    %v204 = vpack.c.b16 %v150, %v148
    %v205 = vpack.c.b16 %v151, %v149
    %v206 = vpack.c.b16 %v154, %v152
    %v207 = vpack.c.b16 %v155, %v153
    %v208 = vpack.c.b16 %v158, %v156
    %v209 = vpack.c.b16 %v159, %v157
    %v210 = vpack.c.b16 %v162, %v160
    %v211 = vpack.c.b16 %v163, %v161
    %v212 = vpack.c.b16 %v166, %v164
    %v213 = vpack.c.b16 %v167, %v165
    %v214 = vpack.c.b16 %v170, %v168
    %v215 = vpack.c.b16 %v171, %v169
    %v216 = vpack.c.b16 %v174, %v172
    %v217 = vpack.c.b16 %v175, %v173
    %v218 = vpack.c.b16 %v178, %v176
    %v219 = vpack.c.b16 %v179, %v177
    %v220 = vpack.c.b16 %v182, %v180
    %v221 = vpack.c.b16 %v183, %v181
    %v222 = vpack.c.b16 %v186, %v184
    %v223 = vpack.c.b16 %v187, %v185
    %v224 = vpack.c.b16 %v190, %v188
    %v225 = vpack.c.b16 %v191, %v189
    %v226 = vpack.c.b16 %v194, %v192
    %v227 = vpack.c.b16 %v195, %v193
    %260 = vmatpush.bf16.msra.mxu0 %v210
    %261 = vmatpush.bf16.msra.mxu0 %v208
    %262 = vmatpush.bf16.msra.mxu0 %v206
    %263 = vmatpush.bf16.msra.mxu0 %v204
    %264 = vmatpush.bf16.msra.mxu0 %v202
    %265 = vmatpush.bf16.msra.mxu0 %v200
    %266 = vmatpush.bf16.msra.mxu0 %v198
    %267 = vmatpush.bf16.msra.mxu0 %v196
    %268 = vmatmul.bf16.gmra.mxu0 %v60
    %v269 = vpop.f32.mrf.mxu0
    %v270 = vadd.f32 %v96, %v269
    %v271 = vpop.f32.mrf.mxu0
    %272 = vdwg.mxu0
    %273 = vmatpush.bf16.msra.mxu0 %v226
    %274 = vmatpush.bf16.msra.mxu0 %v224
    %275 = vmatpush.bf16.msra.mxu0 %v222
    %276 = vmatpush.bf16.msra.mxu0 %v220
    %277 = vmatpush.bf16.msra.mxu0 %v218
    %278 = vmatpush.bf16.msra.mxu0 %v216
    %279 = vmatpush.bf16.msra.mxu0 %v214
    %280 = vmatpush.bf16.msra.mxu0 %v212
    %281 = vmatmul.bf16.gmra.mxu0 %v61
    %v282 = vpop.f32.mrf.mxu0
    %v283 = vadd.f32 %v270, %v282
    %v284 = vpop.f32.mrf.mxu0
    %285 = vdwg.mxu0
    %286 = vmatpush.bf16.msra.mxu0 %v211
    %287 = vmatpush.bf16.msra.mxu0 %v209
    %288 = vmatpush.bf16.msra.mxu0 %v207
    %289 = vmatpush.bf16.msra.mxu0 %v205
    %290 = vmatpush.bf16.msra.mxu0 %v203
    %291 = vmatpush.bf16.msra.mxu0 %v201
    %292 = vmatpush.bf16.msra.mxu0 %v199
    %293 = vmatpush.bf16.msra.mxu0 %v197
    %294 = vmatmul.bf16.gmra.mxu0 %v60
    %v295 = vpop.f32.mrf.mxu0
    %v296 = vadd.f32 %v97, %v295
    %v297 = vpop.f32.mrf.mxu0
    %298 = vdwg.mxu0
    %299 = vmatpush.bf16.msra.mxu0 %v227
    %300 = vmatpush.bf16.msra.mxu0 %v225
    %301 = vmatpush.bf16.msra.mxu0 %v223
    %302 = vmatpush.bf16.msra.mxu0 %v221
    %303 = vmatpush.bf16.msra.mxu0 %v219
    %304 = vmatpush.bf16.msra.mxu0 %v217
    %305 = vmatpush.bf16.msra.mxu0 %v215
    %306 = vmatpush.bf16.msra.mxu0 %v213
    %307 = vmatmul.bf16.gmra.mxu0 %v61
    %v308 = vpop.f32.mrf.mxu0
    %v309 = vadd.f32 %v296, %v308
    %v310 = vpop.f32.mrf.mxu0
    %311 = vdwg.mxu0
    %312 = vst [vmem:[#allocation8] sm:$0xff] %v283
    %313 = vst [vmem:[#allocation8 + $0x8] sm:$0xff] %v309
    // Predicated region
    $region26: #{tpu_custom_call.1} parent=1 // pred_check
      _
    $region27: #{tpu_custom_call.1} parent=1 // pred_check_branch
      %315 = sbr.rel (0) target = $region29
    $region28: #{tpu_custom_call.1} parent=1 // pred_region
      %317 = vsyncadd [#allocation4], 0
      %s319 = sshll.u32 [#allocation8], 4
      %s320 = int_to_ptr.vmem [resolvable:$true] %s319
      %s321 = sshll.u32 %s3, 4
      %s322 = int_to_ptr.hbm [resolvable:$true] %s321
      %324 = dma.vmem_to_hbm [thread:$0]  %s320, 256, %s322, [#allocation4]
    $region29: #{tpu_custom_call.1} parent=1 // pred_fallthru
      _
    // Predicated region
    $region30: #{tpu_custom_call.1} parent=1 // pred_check
      _
    $region31: #{tpu_custom_call.1} parent=1 // pred_check_branch
      %326 = sbr.rel (0) target = $region33
    $region32: #{tpu_custom_call.1} parent=1 // pred_region
      %328 = dma.done [#allocation4], 256
    $region33: #{tpu_custom_call.1} parent=1 // pred_fallthru
      _
    %329 = vsyncpa [#allocation3], 1
    %330 = vsyncpa [#allocation6], 1
    %331 = vsyncpa [#allocation4], 1

// kernel: tpu_custom_call.1
$region0: #{tpu_custom_call.1}
  #allocation0 [shape = 'u32[]', space=smem, size = 0x4, offset = 0x4, fixed_abs, tag = 'smem constant byte address 0x4 - core index']
  #allocation1 [shape = 'u32[72,128]{1,0:T(1,128)}', space=vmem, size = 0x9000, scoped, tag = 'internal scratch']
  %s0 = inlined_call_operand.hbm [shape: bf16[256,256], index: 0, kind: input, shape index: {}]
  %s1 = inlined_call_operand.hbm [shape: f32[1,256], index: 1, kind: input, shape index: {}]
  %s2 = inlined_call_operand.hbm [shape: f32[8,256], index: 2, kind: input, shape index: {}]
  %s3 = inlined_call_operand.hbm [shape: f32[8,256], index: 3, kind: output, shape index: {}]
  %s4 = sld [smem:[#allocation0]]
  $region34: #{tpu_custom_call.1} parent=0
    _
  %s6 = ssub.s32 1, %s4
  %s7 = scalar_select 0, %s6, %s4
  $region1: #{tpu_custom_call.1} parent=0
    #allocation2 [shape = 'u8[131072]{0}', space=vmem, size = 0x20000, scoped, tag = 'input window, operand 0, single buffered']
    #allocation3 [shape = 's32[1]{0}', space=sflag, size = 0x4, scoped, tag = 'scoped memory for tpu_custom_call.1']
    #allocation4 [shape = 's32[1]{0}', space=sflag, size = 0x4, scoped, tag = 'scoped memory for tpu_custom_call.1']
    #allocation5 [shape = 'u8[1024]{0}', space=vmem, size = 0x400, scoped, tag = 'input window, operand 1, single buffered']
    #allocation6 [shape = 's32[1]{0}', space=sflag, size = 0x4, scoped, tag = 'scoped memory for tpu_custom_call.1']
    #allocation7 [shape = 'u8[8192]{0}', space=vmem, size = 0x2000, scoped, tag = 'input window, operand 2, single buffered']
    #allocation8 [shape = 'u8[8192]{0}', space=vmem, size = 0x2000, scoped, tag = 'output window, operand 0, single buffered']
    %8 = vsyncpa [#allocation3], 0
    %9 = vsyncpa [#allocation6], 0
    %10 = vsyncpa [#allocation4], 0
    // Predicated region
    $region2: #{tpu_custom_call.1} parent=1 // pred_check
      _
    $region3: #{tpu_custom_call.1} parent=1 // pred_check_branch
      %12 = sbr.rel (0) target = $region5
    $region4: #{tpu_custom_call.1} parent=1 // pred_region
      %14 = vsyncadd [#allocation3], 0
      %s15 = sshll.u32 %s0, 4
      %s16 = int_to_ptr.hbm [resolvable:$true] %s15
      %s17 = sshll.u32 [#allocation2], 4
      %s18 = int_to_ptr.vmem [resolvable:$true] %s17
      %23 = dma.hbm_to_vmem [thread:$0]  %s16, 4096, %s18, [#allocation3], 128, 128, 8
    $region5: #{tpu_custom_call.1} parent=1 // pred_fallthru
      _
    // Predicated region
    $region6: #{tpu_custom_call.1} parent=1 // pred_check
      _
    $region7: #{tpu_custom_call.1} parent=1 // pred_check_branch
      %25 = sbr.rel (0) target = $region9
    $region8: #{tpu_custom_call.1} parent=1 // pred_region
      %27 = vsyncadd [#allocation6], 0
      %s29 = sshll.u32 %s1, 4
      %s30 = int_to_ptr.hbm [resolvable:$true] %s29
      %s31 = sshll.u32 [#allocation5], 4
      %s32 = int_to_ptr.vmem [resolvable:$true] %s31
      %34 = dma.hbm_to_vmem [thread:$0]  %s30, 32, %s32, [#allocation6]
    $region9: #{tpu_custom_call.1} parent=1 // pred_fallthru
      _
    // Predicated region
    $region10: #{tpu_custom_call.1} parent=1 // pred_check
      _
    $region11: #{tpu_custom_call.1} parent=1 // pred_check_branch
      %36 = sbr.rel (0) target = $region13
    $region12: #{tpu_custom_call.1} parent=1 // pred_region
      %38 = vsyncadd [#allocation6], 0
      %s40 = sshll.u32 %s2, 4
      %s41 = int_to_ptr.hbm [resolvable:$true] %s40
      %s42 = sshll.u32 [#allocation7], 4
      %s43 = int_to_ptr.vmem [resolvable:$true] %s42
      %45 = dma.hbm_to_vmem [thread:$0]  %s41, 256, %s43, [#allocation6]
    $region13: #{tpu_custom_call.1} parent=1 // pred_fallthru
      _
    // Predicated region
    $region14: #{tpu_custom_call.1} parent=1 // pred_check
      _
    $region15: #{tpu_custom_call.1} parent=1 // pred_check_branch
      %47 = sbr.rel (0) target = $region17
    $region16: #{tpu_custom_call.1} parent=1 // pred_region
      %49 = dma.done [#allocation3], 4096
    $region17: #{tpu_custom_call.1} parent=1 // pred_fallthru
      _
    // Predicated region
    $region18: #{tpu_custom_call.1} parent=1 // pred_check
      _
    $region19: #{tpu_custom_call.1} parent=1 // pred_check_branch
      %51 = sbr.rel (0) target = $region21
    $region20: #{tpu_custom_call.1} parent=1 // pred_region
      %53 = dma.done [#allocation6], 32
    $region21: #{tpu_custom_call.1} parent=1 // pred_fallthru
      _
    // Predicated region
    $region22: #{tpu_custom_call.1} parent=1 // pred_check
      _
    $region23: #{tpu_custom_call.1} parent=1 // pred_check_branch
      %55 = sbr.rel (0) target = $region25
    $region24: #{tpu_custom_call.1} parent=1 // pred_region
      %57 = dma.done [#allocation6], 256
    $region25: #{tpu_custom_call.1} parent=1 // pred_fallthru
      _
    %v58 = vld [vmem:[#allocation7] sm:$0xff]
    %v59 = vld [vmem:[#allocation7 + $0x8] sm:$0xff]
    %v60 = vpack.c.bf16 %v58, %v58
    %v61 = vpack.c.bf16 %v59, %v59
    %v62 = vld [vmem:[#allocation2] sm:$0xff]
    %v63 = vld [vmem:[#allocation2 + $0x8] sm:$0xff]
    %v64 = vld [vmem:[#allocation2 + $0x10] sm:$0xff]
    %v65 = vld [vmem:[#allocation2 + $0x18] sm:$0xff]
    %v66 = vld [vmem:[#allocation2 + $0x20] sm:$0xff]
    %v67 = vld [vmem:[#allocation2 + $0x28] sm:$0xff]
    %v68 = vld [vmem:[#allocation2 + $0x30] sm:$0xff]
    %v69 = vld [vmem:[#allocation2 + $0x38] sm:$0xff]
    %v70 = vld [vmem:[#allocation2 + $0x40] sm:$0xff]
    %v71 = vld [vmem:[#allocation2 + $0x48] sm:$0xff]
    %v72 = vld [vmem:[#allocation2 + $0x50] sm:$0xff]
    %v73 = vld [vmem:[#allocation2 + $0x58] sm:$0xff]
    %v74 = vld [vmem:[#allocation2 + $0x60] sm:$0xff]
    %v75 = vld [vmem:[#allocation2 + $0x68] sm:$0xff]
    %v76 = vld [vmem:[#allocation2 + $0x70] sm:$0xff]
    %v77 = vld [vmem:[#allocation2 + $0x78] sm:$0xff]
    %v78 = vld [vmem:[#allocation2 + $0x80] sm:$0xff]
    %v79 = vld [vmem:[#allocation2 + $0x88] sm:$0xff]
    %v80 = vld [vmem:[#allocation2 + $0x90] sm:$0xff]
    %v81 = vld [vmem:[#allocation2 + $0x98] sm:$0xff]
    %v82 = vld [vmem:[#allocation2 + $0xa0] sm:$0xff]
    %v83 = vld [vmem:[#allocation2 + $0xa8] sm:$0xff]
    %v84 = vld [vmem:[#allocation2 + $0xb0] sm:$0xff]
    %v85 = vld [vmem:[#allocation2 + $0xb8] sm:$0xff]
    %v86 = vld [vmem:[#allocation2 + $0xc0] sm:$0xff]
    %v87 = vld [vmem:[#allocation2 + $0xc8] sm:$0xff]
    %v88 = vld [vmem:[#allocation2 + $0xd0] sm:$0xff]
    %v89 = vld [vmem:[#allocation2 + $0xd8] sm:$0xff]
    %v90 = vld [vmem:[#allocation2 + $0xe0] sm:$0xff]
    %v91 = vld [vmem:[#allocation2 + $0xe8] sm:$0xff]
    %v92 = vld [vmem:[#allocation2 + $0xf0] sm:$0xff]
    %v93 = vld [vmem:[#allocation2 + $0xf8] sm:$0xff]
    %v94 = vld [vmem:[#allocation5] sm:$0x3]
    %v96 = vperm.slane %v94, 0
    %v97 = vperm.slane %v94, 1
    %v132 = vunpack.c.l.b16 %v62
    %v133 = vunpack.c.h.b16 %v62
    %v134 = vunpack.c.l.b16 %v63
    %v135 = vunpack.c.h.b16 %v63
    %v136 = vunpack.c.l.b16 %v64
    %v137 = vunpack.c.h.b16 %v64
    %v138 = vunpack.c.l.b16 %v65
    %v139 = vunpack.c.h.b16 %v65
    %v140 = vunpack.c.l.b16 %v66
    %v141 = vunpack.c.h.b16 %v66
    %v142 = vunpack.c.l.b16 %v67
    %v143 = vunpack.c.h.b16 %v67
    %v144 = vunpack.c.l.b16 %v68
    %v145 = vunpack.c.h.b16 %v68
    %v146 = vunpack.c.l.b16 %v69
    %v147 = vunpack.c.h.b16 %v69
    %v148 = vunpack.c.l.b16 %v70
    %v149 = vunpack.c.h.b16 %v70
    %v150 = vunpack.c.l.b16 %v71
    %v151 = vunpack.c.h.b16 %v71
    %v152 = vunpack.c.l.b16 %v72
    %v153 = vunpack.c.h.b16 %v72
    %v154 = vunpack.c.l.b16 %v73
    %v155 = vunpack.c.h.b16 %v73
    %v156 = vunpack.c.l.b16 %v74
    %v157 = vunpack.c.h.b16 %v74
    %v158 = vunpack.c.l.b16 %v75
    %v159 = vunpack.c.h.b16 %v75
    %v160 = vunpack.c.l.b16 %v76
    %v161 = vunpack.c.h.b16 %v76
    %v162 = vunpack.c.l.b16 %v77
    %v163 = vunpack.c.h.b16 %v77
    %v164 = vunpack.c.l.b16 %v78
    %v165 = vunpack.c.h.b16 %v78
    %v166 = vunpack.c.l.b16 %v79
    %v167 = vunpack.c.h.b16 %v79
    %v168 = vunpack.c.l.b16 %v80
    %v169 = vunpack.c.h.b16 %v80
    %v170 = vunpack.c.l.b16 %v81
    %v171 = vunpack.c.h.b16 %v81
    %v172 = vunpack.c.l.b16 %v82
    %v173 = vunpack.c.h.b16 %v82
    %v174 = vunpack.c.l.b16 %v83
    %v175 = vunpack.c.h.b16 %v83
    %v176 = vunpack.c.l.b16 %v84
    %v177 = vunpack.c.h.b16 %v84
    %v178 = vunpack.c.l.b16 %v85
    %v179 = vunpack.c.h.b16 %v85
    %v180 = vunpack.c.l.b16 %v86
    %v181 = vunpack.c.h.b16 %v86
    %v182 = vunpack.c.l.b16 %v87
    %v183 = vunpack.c.h.b16 %v87
    %v184 = vunpack.c.l.b16 %v88
    %v185 = vunpack.c.h.b16 %v88
    %v186 = vunpack.c.l.b16 %v89
    %v187 = vunpack.c.h.b16 %v89
    %v188 = vunpack.c.l.b16 %v90
    %v189 = vunpack.c.h.b16 %v90
    %v190 = vunpack.c.l.b16 %v91
    %v191 = vunpack.c.h.b16 %v91
    %v192 = vunpack.c.l.b16 %v92
    %v193 = vunpack.c.h.b16 %v92
    %v194 = vunpack.c.l.b16 %v93
    %v195 = vunpack.c.h.b16 %v93
    %v196 = vpack.c.b16 %v134, %v132
    %v197 = vpack.c.b16 %v135, %v133
    %v198 = vpack.c.b16 %v138, %v136
    %v199 = vpack.c.b16 %v139, %v137
    %v200 = vpack.c.b16 %v142, %v140
    %v201 = vpack.c.b16 %v143, %v141
    %v202 = vpack.c.b16 %v146, %v144
    %v203 = vpack.c.b16 %v147, %v145
    %v204 = vpack.c.b16 %v150, %v148
    %v205 = vpack.c.b16 %v151, %v149
    %v206 = vpack.c.b16 %v154, %v152
    %v207 = vpack.c.b16 %v155, %v153
    %v208 = vpack.c.b16 %v158, %v156
    %v209 = vpack.c.b16 %v159, %v157
    %v210 = vpack.c.b16 %v162, %v160
    %v211 = vpack.c.b16 %v163, %v161
    %v212 = vpack.c.b16 %v166, %v164
    %v213 = vpack.c.b16 %v167, %v165
    %v214 = vpack.c.b16 %v170, %v168
    %v215 = vpack.c.b16 %v171, %v169
    %v216 = vpack.c.b16 %v174, %v172
    %v217 = vpack.c.b16 %v175, %v173
    %v218 = vpack.c.b16 %v178, %v176
    %v219 = vpack.c.b16 %v179, %v177
    %v220 = vpack.c.b16 %v182, %v180
    %v221 = vpack.c.b16 %v183, %v181
    %v222 = vpack.c.b16 %v186, %v184
    %v223 = vpack.c.b16 %v187, %v185
    %v224 = vpack.c.b16 %v190, %v188
    %v225 = vpack.c.b16 %v191, %v189
    %v226 = vpack.c.b16 %v194, %v192
    %v227 = vpack.c.b16 %v195, %v193
    %260 = vmatpush.bf16.msra.mxu0 %v210
    %261 = vmatpush.bf16.msra.mxu0 %v208
    %262 = vmatpush.bf16.msra.mxu0 %v206
    %263 = vmatpush.bf16.msra.mxu0 %v204
    %264 = vmatpush.bf16.msra.mxu0 %v202
    %265 = vmatpush.bf16.msra.mxu0 %v200
    %266 = vmatpush.bf16.msra.mxu0 %v198
    %267 = vmatpush.bf16.msra.mxu0 %v196
    %268 = vmatmul.bf16.gmra.mxu0 %v60
    %v269 = vpop.f32.mrf.mxu0
    %v270 = vadd.f32 %v96, %v269
    %v271 = vpop.f32.mrf.mxu0
    %272 = vdwg.mxu0
    %273 = vmatpush.bf16.msra.mxu0 %v226
    %274 = vmatpush.bf16.msra.mxu0 %v224
    %275 = vmatpush.bf16.msra.mxu0 %v222
    %276 = vmatpush.bf16.msra.mxu0 %v220
    %277 = vmatpush.bf16.msra.mxu0 %v218
    %278 = vmatpush.bf16.msra.mxu0 %v216
    %279 = vmatpush.bf16.msra.mxu0 %v214
    %280 = vmatpush.bf16.msra.mxu0 %v212
    %281 = vmatmul.bf16.gmra.mxu0 %v61
    %v282 = vpop.f32.mrf.mxu0
    %v283 = vadd.f32 %v270, %v282
    %v284 = vpop.f32.mrf.mxu0
    %285 = vdwg.mxu0
    %286 = vmatpush.bf16.msra.mxu0 %v211
    %287 = vmatpush.bf16.msra.mxu0 %v209
    %288 = vmatpush.bf16.msra.mxu0 %v207
    %289 = vmatpush.bf16.msra.mxu0 %v205
    %290 = vmatpush.bf16.msra.mxu0 %v203
    %291 = vmatpush.bf16.msra.mxu0 %v201
    %292 = vmatpush.bf16.msra.mxu0 %v199
    %293 = vmatpush.bf16.msra.mxu0 %v197
    %294 = vmatmul.bf16.gmra.mxu0 %v60
    %v295 = vpop.f32.mrf.mxu0
    %v296 = vadd.f32 %v97, %v295
    %v297 = vpop.f32.mrf.mxu0
    %298 = vdwg.mxu0
    %299 = vmatpush.bf16.msra.mxu0 %v227
    %300 = vmatpush.bf16.msra.mxu0 %v225
    %301 = vmatpush.bf16.msra.mxu0 %v223
    %302 = vmatpush.bf16.msra.mxu0 %v221
    %303 = vmatpush.bf16.msra.mxu0 %v219
    %304 = vmatpush.bf16.msra.mxu0 %v217
    %305 = vmatpush.bf16.msra.mxu0 %v215
    %306 = vmatpush.bf16.msra.mxu0 %v213
    %307 = vmatmul.bf16.gmra.mxu0 %v61
    %v308 = vpop.f32.mrf.mxu0
    %v309 = vadd.f32 %v296, %v308
    %v310 = vpop.f32.mrf.mxu0
    %311 = vdwg.mxu0
    %312 = vst [vmem:[#allocation8] sm:$0xff] %v283
    %313 = vst [vmem:[#allocation8 + $0x8] sm:$0xff] %v309
    // Predicated region
    $region26: #{tpu_custom_call.1} parent=1 // pred_check
      _
    $region27: #{tpu_custom_call.1} parent=1 // pred_check_branch
      %315 = sbr.rel (0) target = $region29
    $region28: #{tpu_custom_call.1} parent=1 // pred_region
      %317 = vsyncadd [#allocation4], 0
      %s319 = sshll.u32 [#allocation8], 4
      %s320 = int_to_ptr.vmem [resolvable:$true] %s319
      %s321 = sshll.u32 %s3, 4
      %s322 = int_to_ptr.hbm [resolvable:$true] %s321
      %324 = dma.vmem_to_hbm [thread:$0]  %s320, 256, %s322, [#allocation4]
    $region29: #{tpu_custom_call.1} parent=1 // pred_fallthru
      _
    // Predicated region
    $region30: #{tpu_custom_call.1} parent=1 // pred_check
      _
    $region31: #{tpu_custom_call.1} parent=1 // pred_check_branch
      %326 = sbr.rel (0) target = $region33
    $region32: #{tpu_custom_call.1} parent=1 // pred_region
      %328 = dma.done [#allocation4], 256
    $region33: #{tpu_custom_call.1} parent=1 // pred_fallthru
      _
    %329 = vsyncpa [#allocation3], 1
    %330 = vsyncpa [#allocation6], 1
    %331 = vsyncpa [#allocation4], 1

</llo_original>
